<compile_context>
chip_gen: v6e
topology: v6e:2x2x1
jax: 0.10.0
libtpu: 0.0.40
codegen_flags: <defaults>
</compile_context>

<pallas_src>
import functools

import jax
import jax.numpy as jnp
import numpy as np
from jax.experimental import pallas as pl
from jax.experimental.pallas import tpu as pltpu

LANE = 128
MAX_TBL = 2048          # keeps (TBL, 3C) f32 intermediates tiny vs scoped VMEM


def _round_up(x, m):
    return (x + m - 1) // m * m


def _choose_tb(batch, seq_len):
    """Pick the per-step batch tile.

    Goals (in order): keep >=2 grid steps (v7x megacore), keep TBL = tb*L under
    the VMEM-friendly cap, prefer tb a multiple of 8 with TBL >= 256 so the
    matmul M dimension fills the MXU and the output block is sublane-dense.
    """
    divisors = [tb for tb in range(1, batch + 1) if batch % tb == 0]
    ok = [tb for tb in divisors
          if tb * seq_len <= MAX_TBL and (batch // tb >= 2 or batch == 1)]
    if not ok:
        ok = [tb for tb in divisors if tb * seq_len <= MAX_TBL] or [1]
    full_mxu = [tb for tb in ok if tb % 8 == 0 and tb * seq_len >= 256]
    if full_mxu:
        return min(full_mxu)          # smallest such -> most parallel grid steps
    sublane_ok = [tb for tb in ok if tb % 8 == 0]
    if sublane_ok:
        return max(sublane_ok)
    return max(ok)


def _cnn_encoder_kernel(tok_ref, wfold_ref, bconv_ref, wfc_ref, bfc_ref,
                        out_ref, *, TB, L, C, Vp):
    """One grid step processes TB sequences (TB*L rows, batch-major).

    tok_ref:   (TB*L, 1)  int32   token ids for this batch tile
    wfold_ref: (Vp, 3*C)  bf16    embedding table folded into conv taps
                                  [table@W0 | table@W1 | table@W2]
    bconv_ref: (1, C)     f32
    wfc_ref:   (C, Opad)  bf16
    bfc_ref:   (1, Opad)  f32
    out_ref:   (TB, Opad) f32
    """
    TBL = TB * L

    # --- gather + Conv1d taps fused into ONE MXU matmul -----------------------
    # one-hot row-pick is exact in bf16 (f32 accumulation), so p[r] is exactly
    # the bf16 folded weight row for token tok[r].
    tok = tok_ref[...]                                             # (TBL, 1)
    vocab_iota = jax.lax.broadcasted_iota(jnp.int32, (TBL, Vp), 1)
    onehot = (vocab_iota == tok).astype(jnp.bfloat16)              # (TBL, Vp)
    p = jnp.dot(onehot, wfold_ref[...],
                preferred_element_type=jnp.float32)                # (TBL, 3C) f32

    p0 = p[:, 0 * C:1 * C]      # x[t] @ W0  -> contributes to y[t+1]
    p1 = p[:, 1 * C:2 * C]      # x[t] @ W1  -> contributes to y[t]
    p2 = p[:, 2 * C:3 * C]      # x[t] @ W2  -> contributes to y[t-1]

    # Conv halo / zero padding: sublane shifts (XLU) + narrow boundary masks.
    # t_idx is (TBL, 1); jnp.where broadcasts it across the 128 lanes.
    t_idx = jax.lax.broadcasted_iota(jnp.int32, (TBL, 1), 0) % L
    zero = jnp.float32(0.0)
    left = jnp.where(t_idx == 0, zero, pltpu.roll(p0, shift=1, axis=0))
    right = jnp.where(t_idx == L - 1, zero,
                      pltpu.roll(p2, shift=TBL - 1, axis=0))
    y = jnp.maximum(left + p1 + right + bconv_ref[...], 0.0)       # (TBL, C) f32

    # --- AdaptiveMaxPool1d(1): global max over the sequence -------------------
    pooled = jnp.max(y.reshape(TB, L, C), axis=1)                  # (TB, C)

    # --- Linear (output lane-padded to Opad; zero-padded cols stay zero) ------
    out = jnp.dot(pooled.astype(jnp.bfloat16), wfc_ref[...],
                  preferred_element_type=jnp.float32) + bfc_ref[...]
    out_ref[...] = out.astype(out_ref.dtype)


def cnn_encoder_forward(x_tokens, embed_table, conv_w, conv_b, fc_w, fc_b, *,
                        tb=None):
    """x_tokens: (B, L) int token ids. Returns (B, out_dim) float32."""
    B, L = x_tokens.shape
    V, E = embed_table.shape
    C, _, K = conv_w.shape            # torch Conv1d weight: (C_out, C_in, K)
    O = fc_w.shape[0]                 # torch Linear weight: (O, C)

    if tb is None:
        tb = _choose_tb(B, L)
    assert B % tb == 0, "batch must be divisible by the batch tile"

    Vp = _round_up(V, LANE)           # 50  -> 128 (lane-aligned contraction)
    Opad = _round_up(O, LANE)         # 128 -> 128 (lane-dense output)

    # ---- one-time weight prep (tiny; const-folded under jit) -----------------
    # Fold the embedding table into the fused conv-tap weight, in f32; only the
    # final product is cast to bf16 for the MXU.
    w = jnp.transpose(conv_w, (2, 1, 0)).astype(jnp.float32)       # (K, E, C)
    wconv = jnp.transpose(w, (1, 0, 2)).reshape(E, K * C)          # (E, 3C)
    wfold = embed_table.astype(jnp.float32) @ wconv                # (V, 3C) f32
    wfold = jnp.pad(wfold, ((0, Vp - V), (0, 0))).astype(jnp.bfloat16)

    bconv = conv_b.reshape(1, C).astype(jnp.float32)
    wfc = jnp.pad(fc_w.T, ((0, 0), (0, Opad - O))).astype(jnp.bfloat16)
    bfc = jnp.pad(fc_b, (0, Opad - O)).reshape(1, Opad).astype(jnp.float32)

    toks = x_tokens.astype(jnp.int32).reshape(B // tb, tb * L, 1)

    kernel = functools.partial(_cnn_encoder_kernel, TB=tb, L=L, C=C, Vp=Vp)
    full = lambda shape: pl.BlockSpec(shape, lambda i: (0,) * len(shape))

    out = pl.pallas_call(
        kernel,
        out_shape=jax.ShapeDtypeStruct((B // tb, tb, Opad), jnp.float32),
        grid_spec=pltpu.PrefetchScalarGridSpec(
            num_scalar_prefetch=0,
            grid=(B // tb,),
            in_specs=[
                pl.BlockSpec((None, tb * L, 1), lambda i: (i, 0, 0)),  # tokens
                full((Vp, K * C)),       # folded table+conv weight (resident)
                full((1, C)),            # conv bias
                full((C, Opad)),         # fc weight (resident)
                full((1, Opad)),         # fc bias
            ],
            out_specs=pl.BlockSpec((None, tb, Opad), lambda i: (i, 0, 0)),
        ),
        compiler_params=pltpu.CompilerParams(
            dimension_semantics=("parallel",)),
    )(toks, wfold, bconv, wfc, bfc)

    return out.reshape(B, Opad)[:, :O]


def _reference(x_tokens, embed_table, conv_w, conv_b, fc_w, fc_b):
    """Pure-JAX f32 reference mirroring the PyTorch forward."""
    emb = jnp.take(embed_table, x_tokens, axis=0)                  # (B, L, E)
    x = jnp.transpose(emb, (0, 2, 1))                              # NCL
    y = jax.lax.conv_general_dilated(
        x, conv_w, window_strides=(1,), padding=((1, 1),),
        dimension_numbers=("NCH", "OIH", "NCH"))
    y = jnp.maximum(y + conv_b[None, :, None], 0.0)
    pooled = jnp.max(y, axis=-1)                                   # (B, C)
    return pooled @ fc_w.T + fc_b


if __name__ == "__main__":
    vocab_size = 50
    embed_dim = 100          # nn.Embedding(vocab, 100, padding_idx=0)
    conv_channels = 128      # nn.Conv1d(embed_dim, 128, 3, padding=1)
    out_dim = 128            # nn.Linear(128, out_dim) -- module default
    B, L = 2, 8

    key = jax.random.PRNGKey(0)
    k_emb, k_cw, k_cb, k_fw, k_fb, k_x = jax.random.split(key, 6)

    embed_table = 0.1 * jax.random.normal(k_emb, (vocab_size, embed_dim), jnp.float32)
    embed_table = embed_table.at[0].set(0.0)                       # padding_idx=0

    conv_w = 0.1 * jax.random.normal(k_cw, (conv_channels, embed_dim, 3), jnp.float32)
    conv_b = 0.1 * jax.random.normal(k_cb, (conv_channels,), jnp.float32)
    fc_w = 0.1 * jax.random.normal(k_fw, (out_dim, conv_channels), jnp.float32)
    fc_b = 0.1 * jax.random.normal(k_fb, (out_dim,), jnp.float32)

    x_tokens = jax.random.randint(k_x, (B, L), 0, vocab_size, jnp.int32)

    out = cnn_encoder_forward(x_tokens, embed_table, conv_w, conv_b, fc_w, fc_b)
    out = jax.block_until_ready(out)

    ref = _reference(x_tokens, embed_table, conv_w, conv_b, fc_w, fc_b)
    # bf16 MXU operands (f32 accumulation, f32 weight fold) vs f32 reference.
    np.testing.assert_allclose(np.asarray(out), np.asarray(ref), rtol=2e-2, atol=2e-2)

    print("KERNEL_OK")
</pallas_src>

<mosaic_0001>
module attributes {stable_mosaic.version = 11 : i64} {
  func.func @_cnn_encoder_kernel(%arg0: i32, %arg1: memref<1x8x1xi32, #tpu.memory_space<vmem>>, %arg2: memref<128x384xbf16, #tpu.memory_space<vmem>>, %arg3: memref<1x128xf32, #tpu.memory_space<vmem>>, %arg4: memref<128x128xbf16, #tpu.memory_space<vmem>>, %arg5: memref<1x128xf32, #tpu.memory_space<vmem>>, %arg6: memref<1x1x128xf32, #tpu.memory_space<vmem>>) attributes {dimension_semantics = [#tpu.dimension_semantics<parallel>], iteration_bounds = array<i64: 2>, scalar_prefetch = 0 : i64, scratch_operands = 0 : i64, tpu.core_type = #tpu.core_type<tc>, window_params = [{transform_indices = @transform_0, window_bounds = array<i64: 1, 8, 1>}, {pipeline_mode = #tpu.pipeline_mode<synchronous>, transform_indices = @transform_1, window_bounds = array<i64: 128, 384>}, {pipeline_mode = #tpu.pipeline_mode<synchronous>, transform_indices = @transform_2, window_bounds = array<i64: 1, 128>}, {pipeline_mode = #tpu.pipeline_mode<synchronous>, transform_indices = @transform_3, window_bounds = array<i64: 128, 128>}, {pipeline_mode = #tpu.pipeline_mode<synchronous>, transform_indices = @transform_4, window_bounds = array<i64: 1, 128>}, {transform_indices = @transform_5, window_bounds = array<i64: 1, 1, 128>}]} {
    %c0 = arith.constant 0 : index
    %c0_0 = arith.constant 0 : index
    %c0_1 = arith.constant 0 : index
    %0 = vector.load %arg1[%c0, %c0_0, %c0_1] : memref<1x8x1xi32, #tpu.memory_space<vmem>>, vector<1x8x1xi32>
    %1 = vector.shape_cast %0 : vector<1x8x1xi32> to vector<8x1xi32>
    %2 = tpu.iota {dimensions = array<i32: 1>} : vector<8x128xi32>
    %3 = vector.broadcast %1 : vector<8x1xi32> to vector<8x128xi32>
    %4 = arith.cmpi eq, %2, %3 : vector<8x128xi32>
    %5 = arith.extui %4 : vector<8x128xi1> to vector<8x128xi32>
    %6 = arith.sitofp %5 : vector<8x128xi32> to vector<8x128xf32>
    %7 = arith.truncf %6 : vector<8x128xf32> to vector<8x128xbf16>
    %c0_2 = arith.constant 0 : index
    %c0_3 = arith.constant 0 : index
    %8 = vector.load %arg2[%c0_2, %c0_3] : memref<128x384xbf16, #tpu.memory_space<vmem>>, vector<128x384xbf16>
    %cst = arith.constant dense<0.000000e+00> : vector<8x384xf32>
    %9 = tpu.matmul %7, %8, %cst {dimension_numbers = #tpu.dot_dimension_numbers<[1], [0], [0], [1], [0, 0, 1, 1], [], []>} : vector<8x128xbf16>, vector<128x384xbf16>, vector<8x384xf32> -> vector<8x384xf32>
    %10 = vector.extract_strided_slice %9 {offsets = [0, 0], sizes = [8, 128], strides = [1, 1]} : vector<8x384xf32> to vector<8x128xf32>
    %11 = vector.extract_strided_slice %9 {offsets = [0, 128], sizes = [8, 128], strides = [1, 1]} : vector<8x384xf32> to vector<8x128xf32>
    %12 = vector.extract_strided_slice %9 {offsets = [0, 256], sizes = [8, 128], strides = [1, 1]} : vector<8x384xf32> to vector<8x128xf32>
    %13 = tpu.iota {dimensions = array<i32: 0>} : vector<8x1xi32>
    %c8_i32 = arith.constant 8 : i32
    %c0_i32 = arith.constant 0 : i32
    %14 = arith.cmpi eq, %c8_i32, %c0_i32 : i32
    %c1_i32 = arith.constant 1 : i32
    %15 = arith.select %14, %c1_i32, %c8_i32 : i32
    %16 = vector.broadcast %15 : i32 to vector<8x1xi32>
    %17 = arith.remsi %13, %16 : vector<8x1xi32>
    %c0_i32_4 = arith.constant 0 : i32
    %18 = vector.broadcast %c0_i32_4 : i32 to vector<8x1xi32>
    %19 = arith.cmpi ne, %17, %18 : vector<8x1xi32>
    %c0_i32_5 = arith.constant 0 : i32
    %20 = vector.broadcast %c0_i32_5 : i32 to vector<8x1xi32>
    %21 = arith.cmpi slt, %17, %20 : vector<8x1xi32>
    %c0_i32_6 = arith.constant 0 : i32
    %22 = arith.cmpi slt, %15, %c0_i32_6 : i32
    %23 = vector.broadcast %22 : i1 to vector<8x1xi1>
    %24 = vector.broadcast %23 : vector<8x1xi1> to vector<8x1xi1>
    %25 = arith.xori %21, %24 : vector<8x1xi1>
    %26 = arith.andi %25, %19 : vector<8x1xi1>
    %27 = vector.broadcast %15 : i32 to vector<8x1xi32>
    %28 = arith.addi %17, %27 : vector<8x1xi32>
    %29 = arith.select %26, %28, %17 : vector<8x1xi1>, vector<8x1xi32>
    %c0_i32_7 = arith.constant 0 : i32
    %30 = vector.broadcast %c0_i32_7 : i32 to vector<8x1xi32>
    %31 = arith.cmpi eq, %29, %30 : vector<8x1xi32>
    %c1_i32_8 = arith.constant 1 : i32
    %32 = tpu.dynamic_rotate %10 by %c1_i32_8 dim 0 : vector<8x128xf32>, i32 -> vector<8x128xf32>
    %cst_9 = arith.constant 0.000000e+00 : f32
    %33 = vector.shape_cast %31 : vector<8x1xi1> to vector<8x1xi1>
    %34 = vector.broadcast %33 : vector<8x1xi1> to vector<8x128xi1>
    %35 = vector.broadcast %cst_9 : f32 to vector<8x128xf32>
    %36 = arith.select %34, %35, %32 : vector<8x128xi1>, vector<8x128xf32>
    %c7_i32 = arith.constant 7 : i32
    %37 = vector.broadcast %c7_i32 : i32 to vector<8x1xi32>
    %38 = arith.cmpi eq, %29, %37 : vector<8x1xi32>
    %c7_i32_10 = arith.constant 7 : i32
    %39 = tpu.dynamic_rotate %12 by %c7_i32_10 dim 0 : vector<8x128xf32>, i32 -> vector<8x128xf32>
    %cst_11 = arith.constant 0.000000e+00 : f32
    %40 = vector.shape_cast %38 : vector<8x1xi1> to vector<8x1xi1>
    %41 = vector.broadcast %40 : vector<8x1xi1> to vector<8x128xi1>
    %42 = vector.broadcast %cst_11 : f32 to vector<8x128xf32>
    %43 = arith.select %41, %42, %39 : vector<8x128xi1>, vector<8x128xf32>
    %44 = arith.addf %36, %11 : vector<8x128xf32>
    %45 = arith.addf %44, %43 : vector<8x128xf32>
    %c0_12 = arith.constant 0 : index
    %c0_13 = arith.constant 0 : index
    %46 = vector.load %arg3[%c0_12, %c0_13] : memref<1x128xf32, #tpu.memory_space<vmem>>, vector<1x128xf32>
    %47 = vector.broadcast %46 : vector<1x128xf32> to vector<8x128xf32>
    %48 = arith.addf %45, %47 : vector<8x128xf32>
    %cst_14 = arith.constant 0.000000e+00 : f32
    %49 = vector.broadcast %cst_14 : f32 to vector<8x128xf32>
    %50 = arith.maximumf %48, %49 : vector<8x128xf32>
    %51 = vector.shape_cast %50 : vector<8x128xf32> to vector<1x8x128xf32>
    %cst_15 = arith.constant dense<0xFF800000> : vector<1x128xf32>
    %52 = vector.multi_reduction <maximumf>, %51, %cst_15 [1] : vector<1x8x128xf32> to vector<1x128xf32>
    %53 = arith.truncf %52 : vector<1x128xf32> to vector<1x128xbf16>
    %c0_16 = arith.constant 0 : index
    %c0_17 = arith.constant 0 : index
    %54 = vector.load %arg4[%c0_16, %c0_17] : memref<128x128xbf16, #tpu.memory_space<vmem>>, vector<128x128xbf16>
    %cst_18 = arith.constant dense<0.000000e+00> : vector<1x128xf32>
    %55 = tpu.matmul %53, %54, %cst_18 {dimension_numbers = #tpu.dot_dimension_numbers<[1], [0], [0], [1], [0, 0, 1, 1], [], []>} : vector<1x128xbf16>, vector<128x128xbf16>, vector<1x128xf32> -> vector<1x128xf32>
    %c0_19 = arith.constant 0 : index
    %c0_20 = arith.constant 0 : index
    %56 = vector.load %arg5[%c0_19, %c0_20] : memref<1x128xf32, #tpu.memory_space<vmem>>, vector<1x128xf32>
    %57 = arith.addf %55, %56 : vector<1x128xf32>
    %c0_21 = arith.constant 0 : index
    %c0_22 = arith.constant 0 : index
    %c0_23 = arith.constant 0 : index
    %58 = vector.load %arg6[%c0_21, %c0_22, %c0_23] : memref<1x1x128xf32, #tpu.memory_space<vmem>>, vector<1x1x128xf32>
    %59 = vector.shape_cast %58 : vector<1x1x128xf32> to vector<1x128xf32>
    %60 = vector.shape_cast %57 : vector<1x128xf32> to vector<1x1x128xf32>
    tpu.vector_store %arg6[%c0_21, %c0_22, %c0_23], %60 {strides = array<i32>} : memref<1x1x128xf32, #tpu.memory_space<vmem>>, vector<1x1x128xf32>,
    return
  }
  func.func @transform_0(%arg0: i32) -> (i32, i32, i32) {
    %c0_i32 = arith.constant 0 : i32
    %c0_i32_0 = arith.constant 0 : i32
    %c0_i32_1 = arith.constant 0 : i32
    return %arg0, %c0_i32, %c0_i32_0 : i32, i32, i32
  }
  func.func @transform_1(%arg0: i32) -> (i32, i32) {
    %c0_i32 = arith.constant 0 : i32
    %c0_i32_0 = arith.constant 0 : i32
    %c0_i32_1 = arith.constant 0 : i32
    return %c0_i32, %c0_i32_0 : i32, i32
  }
  func.func @transform_2(%arg0: i32) -> (i32, i32) {
    %c0_i32 = arith.constant 0 : i32
    %c0_i32_0 = arith.constant 0 : i32
    %c0_i32_1 = arith.constant 0 : i32
    return %c0_i32, %c0_i32_0 : i32, i32
  }
  func.func @transform_3(%arg0: i32) -> (i32, i32) {
    %c0_i32 = arith.constant 0 : i32
    %c0_i32_0 = arith.constant 0 : i32
    %c0_i32_1 = arith.constant 0 : i32
    return %c0_i32, %c0_i32_0 : i32, i32
  }
  func.func @transform_4(%arg0: i32) -> (i32, i32) {
    %c0_i32 = arith.constant 0 : i32
    %c0_i32_0 = arith.constant 0 : i32
    %c0_i32_1 = arith.constant 0 : i32
    return %c0_i32, %c0_i32_0 : i32, i32
  }
  func.func @transform_5(%arg0: i32) -> (i32, i32, i32) {
    %c0_i32 = arith.constant 0 : i32
    %c0_i32_0 = arith.constant 0 : i32
    %c0_i32_1 = arith.constant 0 : i32
    return %arg0, %c0_i32, %c0_i32_0 : i32, i32, i32
  }
}

</mosaic_0001>

<llo_original>
// kernel: tpu_custom_call.1
$region0: #{tpu_custom_call.1}
  #allocation0 [shape = 'u32[]', space=smem, size = 0x4, offset = 0x4, fixed_abs, tag = 'smem constant byte address 0x4 - core index']
  #allocation1 [shape = 'u32[144,128]{1,0:T(1,128)}', space=vmem, size = 0x12000, scoped, tag = 'internal scratch']
  %s0 = inlined_call_operand.vmem [shape: s32[2,8,1], index: 0, kind: input, shape index: {}]
  %s1 = inlined_call_operand.hbm [shape: bf16[128,384], index: 1, kind: input, shape index: {}]
  %s2 = inlined_call_operand.vmem [shape: f32[1,128], index: 2, kind: input, shape index: {}]
  %s3 = inlined_call_operand.hbm [shape: bf16[128,128], index: 3, kind: input, shape index: {}]
  %s4 = inlined_call_operand.vmem [shape: f32[1,128], index: 4, kind: input, shape index: {}]
  %s5 = inlined_call_operand.hbm [shape: f32[2,1,128], index: 5, kind: output, shape index: {}]
  %s6 = sld [smem:[#allocation0]]
  $region61: #{tpu_custom_call.1} parent=0
    _
  %s8 = ssub.s32 1, %s6
  %s9 = scalar_select 0, %s8, %s6
  $region1: #{tpu_custom_call.1} parent=0
    #allocation2 [shape = 'u8[98304]{0}', space=vmem, size = 0x18000, scoped, tag = 'input window, operand 1, single buffered']
    #allocation3 [shape = 's32[2]{0}', space=sflag, size = 0x8, scoped, tag = 'scoped memory for tpu_custom_call.1']
    #allocation4 [shape = 's32[2]{0}', space=sflag, size = 0x8, scoped, tag = 'scoped memory for tpu_custom_call.1']
    #allocation5 [shape = 'u8[32768]{0}', space=vmem, size = 0x8000, scoped, tag = 'input window, operand 3, single buffered']
    #allocation6 [shape = 's32[1]{0}', space=sflag, size = 0x4, scoped, tag = 'scoped memory for tpu_custom_call.1']
    #allocation7 [shape = 'u8[1024]{0}', space=vmem, size = 0x400, scoped, tag = 'output window, operand 0']
    %10 = vsyncpa [#allocation3], 0
    %11 = vsyncpa [#allocation6], 0
    %12 = vsyncpa [#allocation4], 0
    %s13 = scalar_lea.sflag [#allocation4], 1
    %14 = vsyncpa %s13, 0
    loop: start=0, step=1, limit=4
    $region2: #{tpu_custom_call.1} parent=1 // loop_pre_header
      _
    $region3: #{tpu_custom_call.1} parent=1 // loop_header
      %s16 = sphi 0, %s20
      %p17 = scmp.ge.s32.totalorder %s16, 4
      %s26 = sphi 0, %s28
      %s29 = sphi 0, %s26
      %s30 = sphi 0, %s29
      %s46 = sphi 0, %s30
      %s50 = sphi 0, %s50
      %s52 = sphi 0, %s50
      %s53 = sphi 0, %s52
      %s67 = sphi 0, %s53
      %s71 = sphi 0, %s71
      %s73 = sphi 0, %s71
      %s74 = sphi 0, %s73
      %s88 = sphi 0, %s74
      %s92 = sphi 0, %s92
      %s94 = sphi 0, %s92
      %s95 = sphi 0, %s94
      %s109 = sphi 0, %s95
      %s113 = sphi 0, %s113
      %s115 = sphi 0, %s113
      %s116 = sphi 0, %s115
      %s130 = sphi 0, %s116
      %s136 = sphi 0, %s138
      %s139 = sphi 0, %s136
      %s140 = sphi 0, %s139
      %s156 = sphi 0, %s140
    $region4: #{tpu_custom_call.1} parent=1 // loop_header_branch
      %19 = sbr.rel (%p17) target = $region8
    $region5: #{tpu_custom_call.1} parent=1 // loop_body
      %s21 = ssub.s32 %s16, 1
      %s22 = ssub.s32 %s16, 2
      %s23 = sadd.s32 %s16, 1
      %s24 = ssub.s32 %s16, %s23
      %p25 = scmp.eq.s32.totalorder %s24, 0
      %s27 = sadd.s32 %s26, 1
      %s28 = scalar_select %p25, %s26, %s27
      %p31 = pneg %p25
      %p32 = scmp.eq.s32.totalorder %s16, 1
      %p33 = por %p31, %p32
      %p34 = scmp.ne.s32.totalorder %s26, %s29
      %p35 = scmp.eq.s32.totalorder %s16, 0
      %p36 = por %p34, %p35
      %p37 = scmp.ne.s32.totalorder %s26, %s29
      %p38 = scmp.eq.s32.totalorder %s21, 1
      %p39 = por %p37, %p38
      %p40 = scmp.ne.s32.totalorder %s29, %s30
      %p41 = scmp.eq.s32.totalorder %s21, 0
      %p42 = por %p40, %p41
      %p43 = scmp.ne.s32.totalorder %s29, %s30
      %p44 = scmp.eq.s32.totalorder %s22, 1
      %p45 = por %p43, %p44
      %p47 = scmp.ne.s32.totalorder %s30, %s46
      %p48 = scmp.eq.s32.totalorder %s22, 0
      %p49 = por %p47, %p48
      %s51 = sadd.s32 %s50, 1
      %p54 = scmp.eq.s32.totalorder %s16, 1
      %p55 = scmp.ne.s32.totalorder %s50, %s52
      %p56 = scmp.eq.s32.totalorder %s16, 0
      %p57 = por %p55, %p56
      %p58 = scmp.ne.s32.totalorder %s50, %s52
      %p59 = scmp.eq.s32.totalorder %s21, 1
      %p60 = por %p58, %p59
      %p61 = scmp.ne.s32.totalorder %s52, %s53
      %p62 = scmp.eq.s32.totalorder %s21, 0
      %p63 = por %p61, %p62
      %p64 = scmp.ne.s32.totalorder %s52, %s53
      %p65 = scmp.eq.s32.totalorder %s22, 1
      %p66 = por %p64, %p65
      %p68 = scmp.ne.s32.totalorder %s53, %s67
      %p69 = scmp.eq.s32.totalorder %s22, 0
      %p70 = por %p68, %p69
      %s72 = sadd.s32 %s71, 1
      %p75 = scmp.eq.s32.totalorder %s16, 1
      %p76 = scmp.ne.s32.totalorder %s71, %s73
      %p77 = scmp.eq.s32.totalorder %s16, 0
      %p78 = por %p76, %p77
      %p79 = scmp.ne.s32.totalorder %s71, %s73
      %p80 = scmp.eq.s32.totalorder %s21, 1
      %p81 = por %p79, %p80
      %p82 = scmp.ne.s32.totalorder %s73, %s74
      %p83 = scmp.eq.s32.totalorder %s21, 0
      %p84 = por %p82, %p83
      %p85 = scmp.ne.s32.totalorder %s73, %s74
      %p86 = scmp.eq.s32.totalorder %s22, 1
      %p87 = por %p85, %p86
      %p89 = scmp.ne.s32.totalorder %s74, %s88
      %p90 = scmp.eq.s32.totalorder %s22, 0
      %p91 = por %p89, %p90
      %s93 = sadd.s32 %s92, 1
      %p96 = scmp.eq.s32.totalorder %s16, 1
      %p97 = scmp.ne.s32.totalorder %s92, %s94
      %p98 = scmp.eq.s32.totalorder %s16, 0
      %p99 = por %p97, %p98
      %p100 = scmp.ne.s32.totalorder %s92, %s94
      %p101 = scmp.eq.s32.totalorder %s21, 1
      %p102 = por %p100, %p101
      %p103 = scmp.ne.s32.totalorder %s94, %s95
      %p104 = scmp.eq.s32.totalorder %s21, 0
      %p105 = por %p103, %p104
      %p106 = scmp.ne.s32.totalorder %s94, %s95
      %p107 = scmp.eq.s32.totalorder %s22, 1
      %p108 = por %p106, %p107
      %p110 = scmp.ne.s32.totalorder %s95, %s109
      %p111 = scmp.eq.s32.totalorder %s22, 0
      %p112 = por %p110, %p111
      %s114 = sadd.s32 %s113, 1
      %p117 = scmp.eq.s32.totalorder %s16, 1
      %p118 = scmp.ne.s32.totalorder %s113, %s115
      %p119 = scmp.eq.s32.totalorder %s16, 0
      %p120 = por %p118, %p119
      %p121 = scmp.ne.s32.totalorder %s113, %s115
      %p122 = scmp.eq.s32.totalorder %s21, 1
      %p123 = por %p121, %p122
      %p124 = scmp.ne.s32.totalorder %s115, %s116
      %p125 = scmp.eq.s32.totalorder %s21, 0
      %p126 = por %p124, %p125
      %p127 = scmp.ne.s32.totalorder %s115, %s116
      %p128 = scmp.eq.s32.totalorder %s22, 1
      %p129 = por %p127, %p128
      %p131 = scmp.ne.s32.totalorder %s116, %s130
      %p132 = scmp.eq.s32.totalorder %s22, 0
      %p133 = por %p131, %p132
      %s134 = ssub.s32 %s16, %s23
      %p135 = scmp.eq.s32.totalorder %s134, 0
      %s137 = sadd.s32 %s136, 1
      %s138 = scalar_select %p135, %s136, %s137
      %p141 = pneg %p135
      %p142 = scmp.eq.s32.totalorder %s16, 1
      %p143 = por %p141, %p142
      %p144 = scmp.ne.s32.totalorder %s136, %s139
      %p145 = scmp.eq.s32.totalorder %s16, 0
      %p146 = por %p144, %p145
      %p147 = scmp.ne.s32.totalorder %s136, %s139
      %p148 = scmp.eq.s32.totalorder %s21, 1
      %p149 = por %p147, %p148
      %p150 = scmp.ne.s32.totalorder %s139, %s140
      %p151 = scmp.eq.s32.totalorder %s21, 0
      %p152 = por %p150, %p151
      %p153 = scmp.ne.s32.totalorder %s139, %s140
      %p154 = scmp.eq.s32.totalorder %s22, 1
      %p155 = por %p153, %p154
      %p157 = scmp.ne.s32.totalorder %s140, %s156
      %p158 = scmp.eq.s32.totalorder %s22, 0
      %p159 = por %p157, %p158
      %p160 = scmp.le.s32.totalorder 1, %s16
      %p161 = scmp.lt.s32.totalorder %s16, 3
      %p162 = pnand %p160, %p161
      %p163 = pneg %p162
      // Predicated region
      $region9: #{tpu_custom_call.1} parent=5 // pred_check
        _
      $region10: #{tpu_custom_call.1} parent=5 // pred_check_branch
        %165 = sbr.rel (%p162) target = $region12
      $region11: #{tpu_custom_call.1} parent=5 // pred_region
        %s166 = ssub.s32 %s16, 1
        // Predicated region
        $region13: #{tpu_custom_call.1} parent=11 // pred_check
          %p167 = pneg %p63
        $region14: #{tpu_custom_call.1} parent=11 // pred_check_branch
          %169 = sbr.rel (%p167) target = $region16
        $region15: #{tpu_custom_call.1} parent=11 // pred_region
          %s171 = ssub.s32 3072, 3072
          %172 = vsyncadd [#allocation3], %s171
          %s173 = sshll.u32 [#allocation2], 4
          %s174 = int_to_ptr.vmem [resolvable:$true] %s173
          %179 = dma.hbm_to_vmem [thread:$0]  %s1, 3072, %s174, [#allocation3], 192, 192, 12
        $region16: #{tpu_custom_call.1} parent=11 // pred_fallthru
          _
        // Predicated region
        $region17: #{tpu_custom_call.1} parent=11 // pred_check
          %p180 = pneg %p84
        $region18: #{tpu_custom_call.1} parent=11 // pred_check_branch
          %182 = sbr.rel (%p180) target = $region20
        $region19: #{tpu_custom_call.1} parent=11 // pred_region
          _
        $region20: #{tpu_custom_call.1} parent=11 // pred_fallthru
          _
        // Predicated region
        $region21: #{tpu_custom_call.1} parent=11 // pred_check
          %p183 = pneg %p105
        $region22: #{tpu_custom_call.1} parent=11 // pred_check_branch
          %185 = sbr.rel (%p183) target = $region24
        $region23: #{tpu_custom_call.1} parent=11 // pred_region
          %s187 = ssub.s32 1024, 1024
          %188 = vsyncadd [#allocation6], %s187
          %s189 = sshll.u32 [#allocation5], 4
          %s190 = int_to_ptr.vmem [resolvable:$true] %s189
          %195 = dma.hbm_to_vmem [thread:$0]  %s3, 1024, %s190, [#allocation6], 64, 64, 4
        $region24: #{tpu_custom_call.1} parent=11 // pred_fallthru
          _
        // Predicated region
        $region25: #{tpu_custom_call.1} parent=11 // pred_check
          %p196 = pneg %p126
        $region26: #{tpu_custom_call.1} parent=11 // pred_check_branch
          %198 = sbr.rel (%p196) target = $region28
        $region27: #{tpu_custom_call.1} parent=11 // pred_region
          _
        $region28: #{tpu_custom_call.1} parent=11 // pred_fallthru
          _
      $region12: #{tpu_custom_call.1} parent=5 // pred_fallthru
        _
      %p199 = scmp.lt.s32.totalorder %s16, 2
      // Predicated region
      $region29: #{tpu_custom_call.1} parent=5 // pred_check
        %p200 = pneg %p199
      $region30: #{tpu_custom_call.1} parent=5 // pred_check_branch
        %202 = sbr.rel (%p200) target = $region32
      $region31: #{tpu_custom_call.1} parent=5 // pred_region
        // Predicated region
        $region33: #{tpu_custom_call.1} parent=31 // pred_check
          %p203 = pneg %p36
        $region34: #{tpu_custom_call.1} parent=31 // pred_check_branch
          %205 = sbr.rel (%p203) target = $region36
        $region35: #{tpu_custom_call.1} parent=31 // pred_region
          %p206 = scmp.lt.s32.totalorder %s16, 1
          %s207 = scalar_select %p206, %s16, 1
          %s208 = smul.addr %s207, 8
          %s209 = scalar_lea.vmem %s0, %s208
        $region36: #{tpu_custom_call.1} parent=31 // pred_fallthru
          _
      $region32: #{tpu_custom_call.1} parent=5 // pred_fallthru
        _
      %p210 = scmp.le.s32.totalorder 1, %s16
      %p211 = scmp.lt.s32.totalorder %s16, 3
      %p212 = pnand %p210, %p211
      %p213 = pneg %p212
      // Predicated region
      $region37: #{tpu_custom_call.1} parent=5 // pred_check
        _
      $region38: #{tpu_custom_call.1} parent=5 // pred_check_branch
        %215 = sbr.rel (%p212) target = $region40
      $region39: #{tpu_custom_call.1} parent=5 // pred_region
        %s216 = ssub.s32 %s16, 1
        // Predicated region
        $region41: #{tpu_custom_call.1} parent=39 // pred_check
          %p217 = pneg %p63
        $region42: #{tpu_custom_call.1} parent=39 // pred_check_branch
          %219 = sbr.rel (%p217) target = $region44
        $region43: #{tpu_custom_call.1} parent=39 // pred_region
          %220 = dma.done [#allocation3], 3072
        $region44: #{tpu_custom_call.1} parent=39 // pred_fallthru
          _
        // Predicated region
        $region45: #{tpu_custom_call.1} parent=39 // pred_check
          %p221 = pneg %p105
        $region46: #{tpu_custom_call.1} parent=39 // pred_check_branch
          %223 = sbr.rel (%p221) target = $region48
        $region47: #{tpu_custom_call.1} parent=39 // pred_region
          %224 = dma.done [#allocation6], 1024
        $region48: #{tpu_custom_call.1} parent=39 // pred_fallthru
          _
        %p225 = scmp.lt.s32.totalorder %s21, 1
        %s226 = scalar_select %p225, %s21, 1
        %s227 = smul.addr %s226, 8
        %s228 = scalar_lea.vmem %s0, %s227
        %p229 = pneg %p42
        %p230 = pneg %p39
        %p231 = pneg %p63
        %p232 = pneg %p60
        %p233 = pneg %p84
        %p234 = pneg %p81
        %p235 = pneg %p105
        %p236 = pneg %p102
        %p237 = pneg %p126
        %p238 = pneg %p123
        %p239 = pneg %p152
        %p240 = pneg %p149
        %s241 = sand.u32 %s139, 1
        %s242 = scalar_lea.sflag [#allocation4], %s241
        %s243 = sand.u32 %s139, 1
        %s244 = scalar_lea.vmem [#allocation7], %s243
        %p245 = scmp.lt.s32.totalorder %s21, 1
        %s246 = scalar_select %p245, %s21, 1
        %s247 = smul.addr %s246, 8
        %s248 = scalar_lea.vmem %s0, %s247
        %v250 = vld [vmem:[%s248] sm:$0xff]
        %v251 = vlaneseq
        %v252 = vand.u32 %v251, 127
        %253 = vset.pattern.permute.xlu0 0
        %254 = vperm.xlu0 %253, %v250
        %v255 = vpop.permute.xlu0 %254
        %vm256 = vcmp.eq.s32.totalorder %v252, %v255
        %v257 = vsel %vm256, 1, 0
        %v258 = vcvt.s32.f32 %v257
        %v259 = vpack.c.bf16 %v258, %v258
        %v260 = vld [vmem:[#allocation2] sm:$0xff]
        %v261 = vld [vmem:[#allocation2 + $0x8] sm:$0xf]
        %v262 = vld [vmem:[#allocation2 + $0xc] sm:$0xff]
        %v263 = vld [vmem:[#allocation2 + $0x14] sm:$0xf]
        %v264 = vld [vmem:[#allocation2 + $0x18] sm:$0xff]
        %v265 = vld [vmem:[#allocation2 + $0x20] sm:$0xf]
        %v266 = vld [vmem:[#allocation2 + $0x24] sm:$0xff]
        %v267 = vld [vmem:[#allocation2 + $0x2c] sm:$0xf]
        %v268 = vld [vmem:[#allocation2 + $0x30] sm:$0xff]
        %v269 = vld [vmem:[#allocation2 + $0x38] sm:$0xf]
        %v270 = vld [vmem:[#allocation2 + $0x3c] sm:$0xff]
        %v271 = vld [vmem:[#allocation2 + $0x44] sm:$0xf]
        %v272 = vld [vmem:[#allocation2 + $0x48] sm:$0xff]
        %v273 = vld [vmem:[#allocation2 + $0x50] sm:$0xf]
        %v274 = vld [vmem:[#allocation2 + $0x54] sm:$0xff]
        %v275 = vld [vmem:[#allocation2 + $0x5c] sm:$0xf]
        %v276 = vld [vmem:[#allocation2 + $0x60] sm:$0xff]
        %v277 = vld [vmem:[#allocation2 + $0x68] sm:$0xf]
        %v278 = vld [vmem:[#allocation2 + $0x6c] sm:$0xff]
        %v279 = vld [vmem:[#allocation2 + $0x74] sm:$0xf]
        %v280 = vld [vmem:[#allocation2 + $0x78] sm:$0xff]
        %v281 = vld [vmem:[#allocation2 + $0x80] sm:$0xf]
        %v282 = vld [vmem:[#allocation2 + $0x84] sm:$0xff]
        %v283 = vld [vmem:[#allocation2 + $0x8c] sm:$0xf]
        %v284 = vld [vmem:[#allocation2 + $0x90] sm:$0xff]
        %v285 = vld [vmem:[#allocation2 + $0x98] sm:$0xf]
        %v286 = vld [vmem:[#allocation2 + $0x9c] sm:$0xff]
        %v287 = vld [vmem:[#allocation2 + $0xa4] sm:$0xf]
        %v288 = vld [vmem:[#allocation2 + $0xa8] sm:$0xff]
        %v289 = vld [vmem:[#allocation2 + $0xb0] sm:$0xf]
        %v290 = vld [vmem:[#allocation2 + $0xb4] sm:$0xff]
        %v291 = vld [vmem:[#allocation2 + $0xbc] sm:$0xf]
        %v324 = vunpack.c.l.b16 %v260
        %v325 = vunpack.c.h.b16 %v260
        %v326 = vunpack.c.l.b16 %v261
        %v327 = vunpack.c.l.b16 %v262
        %v328 = vunpack.c.h.b16 %v262
        %v329 = vunpack.c.l.b16 %v263
        %v330 = vunpack.c.l.b16 %v264
        %v331 = vunpack.c.h.b16 %v264
        %v332 = vunpack.c.l.b16 %v265
        %v333 = vunpack.c.l.b16 %v266
        %v334 = vunpack.c.h.b16 %v266
        %v335 = vunpack.c.l.b16 %v267
        %v336 = vunpack.c.l.b16 %v268
        %v337 = vunpack.c.h.b16 %v268
        %v338 = vunpack.c.l.b16 %v269
        %v339 = vunpack.c.l.b16 %v270
        %v340 = vunpack.c.h.b16 %v270
        %v341 = vunpack.c.l.b16 %v271
        %v342 = vunpack.c.l.b16 %v272
        %v343 = vunpack.c.h.b16 %v272
        %v344 = vunpack.c.l.b16 %v273
        %v345 = vunpack.c.l.b16 %v274
        %v346 = vunpack.c.h.b16 %v274
        %v347 = vunpack.c.l.b16 %v275
        %v348 = vunpack.c.l.b16 %v276
        %v349 = vunpack.c.h.b16 %v276
        %v350 = vunpack.c.l.b16 %v277
        %v351 = vunpack.c.l.b16 %v278
        %v352 = vunpack.c.h.b16 %v278
        %v353 = vunpack.c.l.b16 %v279
        %v354 = vunpack.c.l.b16 %v280
        %v355 = vunpack.c.h.b16 %v280
        %v356 = vunpack.c.l.b16 %v281
        %v357 = vunpack.c.l.b16 %v282
        %v358 = vunpack.c.h.b16 %v282
        %v359 = vunpack.c.l.b16 %v283
        %v360 = vunpack.c.l.b16 %v284
        %v361 = vunpack.c.h.b16 %v284
        %v362 = vunpack.c.l.b16 %v285
        %v363 = vunpack.c.l.b16 %v286
        %v364 = vunpack.c.h.b16 %v286
        %v365 = vunpack.c.l.b16 %v287
        %v366 = vunpack.c.l.b16 %v288
        %v367 = vunpack.c.h.b16 %v288
        %v368 = vunpack.c.l.b16 %v289
        %v369 = vunpack.c.l.b16 %v290
        %v370 = vunpack.c.h.b16 %v290
        %v371 = vunpack.c.l.b16 %v291
        %v372 = vpack.c.b16 %v327, %v324
        %v373 = vpack.c.b16 %v328, %v325
        %v374 = vpack.c.b16 %v329, %v326
        %v375 = vpack.c.b16 %v333, %v330
        %v376 = vpack.c.b16 %v334, %v331
        %v377 = vpack.c.b16 %v335, %v332
        %v378 = vpack.c.b16 %v339, %v336
        %v379 = vpack.c.b16 %v340, %v337
        %v380 = vpack.c.b16 %v341, %v338
        %v381 = vpack.c.b16 %v345, %v342
        %v382 = vpack.c.b16 %v346, %v343
        %v383 = vpack.c.b16 %v347, %v344
        %v384 = vpack.c.b16 %v351, %v348
        %v385 = vpack.c.b16 %v352, %v349
        %v386 = vpack.c.b16 %v353, %v350
        %v387 = vpack.c.b16 %v357, %v354
        %v388 = vpack.c.b16 %v358, %v355
        %v389 = vpack.c.b16 %v359, %v356
        %v390 = vpack.c.b16 %v363, %v360
        %v391 = vpack.c.b16 %v364, %v361
        %v392 = vpack.c.b16 %v365, %v362
        %v393 = vpack.c.b16 %v369, %v366
        %v394 = vpack.c.b16 %v370, %v367
        %v395 = vpack.c.b16 %v371, %v368
        %420 = vmatprep.subr.bf16.mxu0 %v394
        %421 = vmatpush1.bf16.msra.mxu0 %v393
        %422 = vmatprep.subr.bf16.mxu0 %v391
        %423 = vmatpush1.bf16.msra.mxu0 %v390
        %424 = vmatprep.subr.bf16.mxu0 %v388
        %425 = vmatpush1.bf16.msra.mxu0 %v387
        %426 = vmatprep.subr.bf16.mxu0 %v385
        %427 = vmatpush1.bf16.msra.mxu0 %v384
        %428 = vmatprep.subr.bf16.mxu0 %v382
        %429 = vmatpush1.bf16.msra.mxu0 %v381
        %430 = vmatprep.subr.bf16.mxu0 %v379
        %431 = vmatpush1.bf16.msra.mxu0 %v378
        %432 = vmatprep.subr.bf16.mxu0 %v376
        %433 = vmatpush1.bf16.msra.mxu0 %v375
        %434 = vmatprep.subr.bf16.mxu0 %v373
        %435 = vmatpush1.bf16.msra.mxu0 %v372
        %436 = vmatprep.subr.bf16.mxu0 0
        %437 = vmatpush2.bf16.msra.mxu0 0
        %438 = vmatprep.subr.bf16.mxu0 0
        %439 = vmatpush2.bf16.msra.mxu0 0
        %440 = vmatprep.subr.bf16.mxu0 0
        %441 = vmatpush2.bf16.msra.mxu0 0
        %442 = vmatprep.subr.bf16.mxu0 0
        %443 = vmatpush2.bf16.msra.mxu0 0
        %444 = vmatprep.subr.bf16.mxu0 0
        %445 = vmatpush2.bf16.msra.mxu0 0
        %446 = vmatprep.subr.bf16.mxu0 0
        %447 = vmatpush2.bf16.msra.mxu0 0
        %448 = vmatprep.subr.bf16.mxu0 0
        %449 = vmatpush2.bf16.msra.mxu0 0
        %450 = vmatprep.subr.bf16.mxu0 0
        %451 = vmatpush2.bf16.msra.mxu0 0
        %452 = vmatprep.mubr.bf16.mxu0 0
        %453 = vmatmul.mubr.bf16.gmra.mxu0 %v259
        %v454 = vpop.f32.mrf.mxu0
        %v455 = vadd.f32 0.0, %v454
        %v456 = vpop.f32.mrf.mxu0
        %v457 = vadd.f32 0.0, %v456
        %v458 = vpop.f32.mrf.mxu0
        %v459 = vpop.f32.mrf.mxu0
        %460 = vdwg.mxu0
        %461 = vmatprep.subr.bf16.mxu0 0
        %462 = vmatpush1.bf16.msra.mxu0 %v395
        %463 = vmatprep.subr.bf16.mxu0 0
        %464 = vmatpush1.bf16.msra.mxu0 %v392
        %465 = vmatprep.subr.bf16.mxu0 0
        %466 = vmatpush1.bf16.msra.mxu0 %v389
        %467 = vmatprep.subr.bf16.mxu0 0
        %468 = vmatpush1.bf16.msra.mxu0 %v386
        %469 = vmatprep.subr.bf16.mxu0 0
        %470 = vmatpush1.bf16.msra.mxu0 %v383
        %471 = vmatprep.subr.bf16.mxu0 0
        %472 = vmatpush1.bf16.msra.mxu0 %v380
        %473 = vmatprep.subr.bf16.mxu0 0
        %474 = vmatpush1.bf16.msra.mxu0 %v377
        %475 = vmatprep.subr.bf16.mxu0 0
        %476 = vmatpush1.bf16.msra.mxu0 %v374
        %477 = vmatprep.subr.bf16.mxu0 0
        %478 = vmatpush2.bf16.msra.mxu0 0
        %479 = vmatprep.subr.bf16.mxu0 0
        %480 = vmatpush2.bf16.msra.mxu0 0
        %481 = vmatprep.subr.bf16.mxu0 0
        %482 = vmatpush2.bf16.msra.mxu0 0
        %483 = vmatprep.subr.bf16.mxu0 0
        %484 = vmatpush2.bf16.msra.mxu0 0
        %485 = vmatprep.subr.bf16.mxu0 0
        %486 = vmatpush2.bf16.msra.mxu0 0
        %487 = vmatprep.subr.bf16.mxu0 0
        %488 = vmatpush2.bf16.msra.mxu0 0
        %489 = vmatprep.subr.bf16.mxu0 0
        %490 = vmatpush2.bf16.msra.mxu0 0
        %491 = vmatprep.subr.bf16.mxu0 0
        %492 = vmatpush2.bf16.msra.mxu0 0
        %493 = vmatprep.mubr.bf16.mxu0 0
        %494 = vmatmul.mubr.bf16.gmra.mxu0 %v259
        %v495 = vpop.f32.mrf.mxu0
        %v496 = vadd.f32 0.0, %v495
        %v497 = vpop.f32.mrf.mxu0
        %v498 = vpop.f32.mrf.mxu0
        %v499 = vpop.f32.mrf.mxu0
        %500 = vdwg.mxu0
        %v501 = vlaneseq
        %v502 = vshrl.u32 %v501, 7
        %vm503 = vcmp.lt.s32.totalorder %v502, 0
        %v504 = vsub.s32 0, %v502
        %v505 = vsel %vm503, %v504, %v502
        %v506 = vshrl.u32 %v505, 3
        %v507 = vand.u32 %v505, 7
        %v508 = vsub.s32 0, %v507
        %v509 = vsel %vm503, %v508, %v507
        %vm510 = vcmp.ne.s32.totalorder %v509, 0
        %vm511 = vcmp.lt.s32.totalorder %v509, 0
        %vm512 = vmand %vm511, %vm510
        %v513 = vadd.s32 %v509, 8
        %v514 = vsel %vm512, %v513, %v509
        %vm515 = vcmp.eq.s32.totalorder %v514, 0
        %v516 = vrot.slane %v455, 7
        %v517 = vsel %vm515, 1, 0
        %vm518 = vcmp.eq.s32.totalorder %v517, 1
        %v519 = vsel %vm518, 0.0, %v516
        %vm520 = vcmp.eq.s32.totalorder %v514, 7
        %v521 = vrot.slane %v496, 1
        %v522 = vsel %vm520, 1, 0
        %vm523 = vcmp.eq.s32.totalorder %v522, 1
        %v524 = vsel %vm523, 0.0, %v521
        %v525 = vadd.f32 %v519, %v457
        %v526 = vadd.f32 %v525, %v524
        %v527 = vld [vmem:[%s2] sm:$0x1]
        %v529 = vlaneseq
        %v530 = vshrl.u32 %v529, 7
        %v531 = vsub.s32 0, %v530
        %v532 = vrot.slane %v527, %v531
        %v534 = vadd.f32 %v526, %v532
        %v535 = vmax.f32 %v534, 0.0
        %v536 = vrot.slane %v535, 4
        %v537 = vmax.f32 %v535, %v536
        %v538 = vrot.slane %v537, 2
        %v539 = vmax.f32 %v537, %v538
        %v540 = vrot.slane %v539, 1
        %v541 = vmax.f32 %v539, %v540
        %v542 = vpack.c.bf16 %v541, %v541
        %v543 = vld [vmem:[#allocation5] sm:$0xf]
        %v544 = vld [vmem:[#allocation5 + $0x4] sm:$0xf]
        %v545 = vld [vmem:[#allocation5 + $0x8] sm:$0xf]
        %v546 = vld [vmem:[#allocation5 + $0xc] sm:$0xf]
        %v547 = vld [vmem:[#allocation5 + $0x10] sm:$0xf]
        %v548 = vld [vmem:[#allocation5 + $0x14] sm:$0xf]
        %v549 = vld [vmem:[#allocation5 + $0x18] sm:$0xf]
        %v550 = vld [vmem:[#allocation5 + $0x1c] sm:$0xf]
        %v551 = vld [vmem:[#allocation5 + $0x20] sm:$0xf]
        %v552 = vld [vmem:[#allocation5 + $0x24] sm:$0xf]
        %v553 = vld [vmem:[#allocation5 + $0x28] sm:$0xf]
        %v554 = vld [vmem:[#allocation5 + $0x2c] sm:$0xf]
        %v555 = vld [vmem:[#allocation5 + $0x30] sm:$0xf]
        %v556 = vld [vmem:[#allocation5 + $0x34] sm:$0xf]
        %v557 = vld [vmem:[#allocation5 + $0x38] sm:$0xf]
        %v558 = vld [vmem:[#allocation5 + $0x3c] sm:$0xf]
        %v559 = vld [vmem:[%s4] sm:$0x1]
        %v576 = vunpack.c.l.b16 %v543
        %v577 = vunpack.c.l.b16 %v544
        %v578 = vunpack.c.l.b16 %v545
        %v579 = vunpack.c.l.b16 %v546
        %v580 = vunpack.c.l.b16 %v547
        %v581 = vunpack.c.l.b16 %v548
        %v582 = vunpack.c.l.b16 %v549
        %v583 = vunpack.c.l.b16 %v550
        %v584 = vunpack.c.l.b16 %v551
        %v585 = vunpack.c.l.b16 %v552
        %v586 = vunpack.c.l.b16 %v553
        %v587 = vunpack.c.l.b16 %v554
        %v588 = vunpack.c.l.b16 %v555
        %v589 = vunpack.c.l.b16 %v556
        %v590 = vunpack.c.l.b16 %v557
        %v591 = vunpack.c.l.b16 %v558
        %v592 = vpack.c.b16 %v577, %v576
        %v593 = vpack.c.b16 %v579, %v578
        %v594 = vpack.c.b16 %v581, %v580
        %v595 = vpack.c.b16 %v583, %v582
        %v596 = vpack.c.b16 %v585, %v584
        %v597 = vpack.c.b16 %v587, %v586
        %v598 = vpack.c.b16 %v589, %v588
        %v599 = vpack.c.b16 %v591, %v590
        %608 = vmatprep.subr.bf16.mxu0 0
        %609 = vmatpush1.bf16.msra.mxu0 %v599
        %610 = vmatprep.subr.bf16.mxu0 0
        %611 = vmatpush1.bf16.msra.mxu0 %v598
        %612 = vmatprep.subr.bf16.mxu0 0
        %613 = vmatpush1.bf16.msra.mxu0 %v597
        %614 = vmatprep.subr.bf16.mxu0 0
        %615 = vmatpush1.bf16.msra.mxu0 %v596
        %616 = vmatprep.subr.bf16.mxu0 0
        %617 = vmatpush1.bf16.msra.mxu0 %v595
        %618 = vmatprep.subr.bf16.mxu0 0
        %619 = vmatpush1.bf16.msra.mxu0 %v594
        %620 = vmatprep.subr.bf16.mxu0 0
        %621 = vmatpush1.bf16.msra.mxu0 %v593
        %622 = vmatprep.subr.bf16.mxu0 0
        %623 = vmatpush1.bf16.msra.mxu0 %v592
        %624 = vmatprep.subr.bf16.mxu0 0
        %625 = vmatpush2.bf16.msra.mxu0 0
        %626 = vmatprep.subr.bf16.mxu0 0
        %627 = vmatpush2.bf16.msra.mxu0 0
        %628 = vmatprep.subr.bf16.mxu0 0
        %629 = vmatpush2.bf16.msra.mxu0 0
        %630 = vmatprep.subr.bf16.mxu0 0
        %631 = vmatpush2.bf16.msra.mxu0 0
        %632 = vmatprep.subr.bf16.mxu0 0
        %633 = vmatpush2.bf16.msra.mxu0 0
        %634 = vmatprep.subr.bf16.mxu0 0
        %635 = vmatpush2.bf16.msra.mxu0 0
        %636 = vmatprep.subr.bf16.mxu0 0
        %637 = vmatpush2.bf16.msra.mxu0 0
        %638 = vmatprep.subr.bf16.mxu0 0
        %639 = vmatpush2.bf16.msra.mxu0 0
        %640 = vmatprep.mubr.bf16.mxu0 0
        %641 = vmatmul.mubr.bf16.gmra.mxu0 %v542
        %v642 = vpop.f32.mrf.mxu0
        %v643 = vadd.f32 %v559, %v642
        %v644 = vpop.f32.mrf.mxu0
        %v645 = vpop.f32.mrf.mxu0
        %v646 = vpop.f32.mrf.mxu0
        %647 = vdwg.mxu0
        %648 = vst [vmem:[%s244] sm:$0x1] %v643
        %s649 = sand.u32 %s139, 1
        %s650 = scalar_lea.sflag [#allocation4], %s649
        %s651 = sand.u32 %s139, 1
        %s652 = scalar_lea.vmem [#allocation7], %s651
        // Predicated region
        $region49: #{tpu_custom_call.1} parent=39 // pred_check
          %p653 = pneg %p149
        $region50: #{tpu_custom_call.1} parent=39 // pred_check_branch
          %655 = sbr.rel (%p653) target = $region52
        $region51: #{tpu_custom_call.1} parent=39 // pred_region
          %s657 = ssub.s32 16, 16
          %658 = vsyncadd %s650, %s657
          %s659 = smul.addr %s21, 16
          %s660 = scalar_lea.hbm %s5, %s659
          %s662 = sshll.u32 %s652, 4
          %s663 = int_to_ptr.vmem [resolvable:$true] %s662
          %665 = dma.vmem_to_hbm [thread:$0]  %s663, 16, %s660, %s650
        $region52: #{tpu_custom_call.1} parent=39 // pred_fallthru
          _
      $region40: #{tpu_custom_call.1} parent=5 // pred_fallthru
        _
      %p666 = scmp.le.s32.totalorder 2, %s16
      // Predicated region
      $region53: #{tpu_custom_call.1} parent=5 // pred_check
        %p667 = pneg %p666
      $region54: #{tpu_custom_call.1} parent=5 // pred_check_branch
        %669 = sbr.rel (%p667) target = $region56
      $region55: #{tpu_custom_call.1} parent=5 // pred_region
        %s670 = ssub.s32 %s16, 2
        // Predicated region
        $region57: #{tpu_custom_call.1} parent=55 // pred_check
          %p671 = pneg %p155
        $region58: #{tpu_custom_call.1} parent=55 // pred_check_branch
          %673 = sbr.rel (%p671) target = $region60
        $region59: #{tpu_custom_call.1} parent=55 // pred_region
          %s674 = sand.u32 %s140, 1
          %s675 = scalar_lea.sflag [#allocation4], %s674
          %s676 = sand.u32 %s140, 1
          %s677 = scalar_lea.vmem [#allocation7], %s676
          %678 = dma.done %s675, 16
        $region60: #{tpu_custom_call.1} parent=55 // pred_fallthru
          _
      $region56: #{tpu_custom_call.1} parent=5 // pred_fallthru
        _
    $region6: #{tpu_custom_call.1} parent=1 // loop_footer
      %s20 = sadd.s32 1, %s16
    $region7: #{tpu_custom_call.1} parent=1 // loop_footer_branch
      %15 = sbr.rel target = $region3
    $region8: #{tpu_custom_call.1} parent=1 // loop_exit
      _
    %679 = vsyncpa [#allocation3], 1
    %s680 = scalar_lea.sflag [#allocation3], 1
    %681 = vsyncpa %s680, 1
    %682 = vsyncpa [#allocation6], 1
    %683 = vsyncpa [#allocation4], 1
    %s684 = scalar_lea.sflag [#allocation4], 1
    %685 = vsyncpa %s684, 1

</llo_original>
